<compile_context>
chip_gen: v5e
topology: v5e:2x2
jax: 0.10.0
libtpu: 0.0.40
codegen_flags: <defaults>
</compile_context>

<pallas_src>
import functools
import math

import jax
import jax.numpy as jnp
import numpy as np
from jax.experimental import pallas as pl
from jax.experimental.pallas import tpu as pltpu

_EPS = 1e-12                     # F.normalize eps
_CLIP = 1e-7                     # clamp(-1+1e-7, 1-1e-7)
_COS_PI_4 = math.cos(math.pi / 4.0)


# ---------------------------------------------------------------------------
# Kernel: per-class-tile cosines + B_avg / target-cosine partial reductions
# ---------------------------------------------------------------------------
def _adacos_logits_kernel(scale_ref, featsn_ref, w_ref, labels_ref,
                          logits_ref, bsum_ref, ctgt_ref,
                          *, tile_c, tiles_per_split, num_classes):
    p = pl.program_id(0)          # class half ("parallel" -> megacore on v7x)
    j = pl.program_id(1)          # class tile within the half ("arbitrary")

    # Per-half partial accumulators: zero once at the start of each half sweep.
    @pl.when(j == 0)
    def _init():
        bsum_ref[...] = jnp.zeros_like(bsum_ref)
        ctgt_ref[...] = jnp.zeros_like(ctgt_ref)

    # Normalize the streamed bf16 weight tile in f32 (rsqrt, no divides).
    w = w_ref[...].astype(jnp.float32)                         # (TC, D)
    wsq = jnp.sum(w * w, axis=1, keepdims=True)                # (TC, 1)
    w_n = w * jax.lax.rsqrt(jnp.maximum(wsq, _EPS * _EPS))     # F.normalize(W)

    # One MXU dot per tile: (B, D) x (TC, D)^T -> (B, TC) cosines, f32 accum.
    logits = jax.lax.dot_general(
        featsn_ref[...], w_n, (((1,), (1,)), ((), ())),
        preferred_element_type=jnp.float32)
    logits_ref[...] = logits

    b = logits.shape[0]
    tile_base = (p * tiles_per_split + j) * tile_c
    col_ids = jax.lax.broadcasted_iota(jnp.int32, (b, tile_c), 1) + tile_base
    is_target = col_ids == labels_ref[...]                     # (B, TC) bool

    # B_avg contribution: exp(old_scale * logits) over non-target columns.
    e = jnp.exp(scale_ref[0] * logits)
    non_target = jnp.logical_not(is_target)
    if num_classes is not None:            # static: only present when C padded
        # TODO(synk): this mask is only needed on the single tile that holds
        # the padded columns; kept unconditional for simplicity (DMA-bound).
        non_target = jnp.logical_and(non_target, col_ids < num_classes)
    row_sum = jnp.sum(jnp.where(non_target, e, 0.0), axis=1, keepdims=True)
    bsum_ref[...] += jnp.sum(row_sum, axis=0, keepdims=True).reshape(1, 1, 1)

    # Clamped target cosine per row (exactly one tile contributes per row).
    clamped = jnp.clip(logits, -1.0 + _CLIP, 1.0 - _CLIP)
    tgt = jnp.sum(jnp.where(is_target, clamped, 0.0), axis=1, keepdims=True)
    ctgt_ref[...] += tgt.reshape(1, b, 1)


# ---------------------------------------------------------------------------
# Wrapper
# ---------------------------------------------------------------------------
def adacos_forward(feats, weight, labels, scale, *, tile_c=4096, num_splits=2):
    """feats: (B, D) f32, weight: (C, D) f32 (PyTorch layout), labels: (B,) int,
    scale: current scalar scale.  Returns (output (B, C), new_scale)."""
    B, D = feats.shape
    C, D2 = weight.shape
    assert D == D2

    # ---- class-tile sizing: big tiles amortize the ~0.35us per-step overhead,
    # capped by a 36 MiB VMEM tile budget (safe for v7x's 64 MiB physical). ----
    tile_c = min(tile_c, max(128, ((pl.cdiv(C, num_splits) + 127) // 128) * 128))
    tile_c = max(128, ((tile_c + 127) // 128) * 128)
    budget = 36 * 1024 * 1024
    while tile_c > 128 and (2 * tile_c * D * 2 + 2 * B * tile_c * 4) > budget:
        tile_c -= 128

    tiles_per_split = pl.cdiv(C, tile_c * num_splits)
    c_pad = tile_c * num_splits * tiles_per_split
    padded = c_pad != C

    # ---- hoisted feats-only work (B*D tiny vs C*D) + bf16 weight stream ----
    fnorm = jnp.sqrt(jnp.sum(feats * feats, axis=1, keepdims=True))
    featsn = feats / jnp.maximum(fnorm, _EPS)                  # F.normalize(feats)
    w_bf16 = weight.astype(jnp.bfloat16)                       # halve W HBM traffic
    if padded:
        w_bf16 = jnp.pad(w_bf16, ((0, c_pad - C), (0, 0)))

    labels2d = labels.reshape(B, 1).astype(jnp.int32)
    scale_arr = jnp.asarray(scale, jnp.float32).reshape(1)

    kern = functools.partial(_adacos_logits_kernel, tile_c=tile_c,
                             tiles_per_split=tiles_per_split,
                             num_classes=(C if padded else None))

    logits, bsum, ctgt = pl.pallas_call(
        kern,
        out_shape=(jax.ShapeDtypeStruct((B, c_pad), jnp.float32),
                   jax.ShapeDtypeStruct((num_splits, 1, 1), jnp.float32),
                   jax.ShapeDtypeStruct((num_splits, B, 1), jnp.float32)),
        grid=(num_splits, tiles_per_split),
        in_specs=[
            pl.BlockSpec(memory_space=pltpu.MemorySpace.SMEM),      # old scale
            pl.BlockSpec((B, D), lambda p, j: (0, 0)),              # featsn (resident)
            pl.BlockSpec((tile_c, D),                               # W tile (streamed)
                         lambda p, j: (p * tiles_per_split + j, 0)),
            pl.BlockSpec((B, 1), lambda p, j: (0, 0)),              # labels (resident)
        ],
        out_specs=(
            pl.BlockSpec((B, tile_c),                               # cosines
                         lambda p, j: (0, p * tiles_per_split + j)),
            pl.BlockSpec((1, 1, 1), lambda p, j: (p, 0, 0)),        # B_avg partials
            pl.BlockSpec((1, B, 1), lambda p, j: (p, 0, 0)),        # target-cos partials
        ),
        compiler_params=pltpu.CompilerParams(
            dimension_semantics=("parallel", "arbitrary"),
            vmem_limit_bytes=48 * 1024 * 1024),
    )(scale_arr, featsn, w_bf16, labels2d)

    # ---- tiny scalar epilogue (the torch.no_grad() scale update) ----
    b_avg = jnp.sum(bsum) / B
    cos_tgt = jnp.sum(ctgt, axis=0)[:, 0]                      # (B,) target cosines
    # torch.median(theta) is the lower median of acos(c); acos is decreasing,
    # so cos(theta_med) is the (B//2)-th smallest clamped target cosine and
    # cos(min(pi/4, theta_med)) == max(cos(pi/4), cos(theta_med)).
    cos_med = jnp.sort(cos_tgt)[B // 2]
    new_scale = jnp.log(b_avg) / jnp.maximum(cos_med, _COS_PI_4)

    # Rescale in plain JAX so XLA fuses the multiply with the un-pad slice.
    logits_valid = logits[:, :C] if padded else logits
    output = new_scale * logits_valid
    return output, new_scale


# ---------------------------------------------------------------------------
# Pure-JAX reference (mirrors the PyTorch forward) for a sanity check
# ---------------------------------------------------------------------------
def adacos_reference(feats, W, labels, scale):
    Wn = W / jnp.maximum(jnp.linalg.norm(W, axis=1, keepdims=True), _EPS)
    fn = feats / jnp.maximum(jnp.linalg.norm(feats, axis=1, keepdims=True), _EPS)
    logits = fn @ Wn.T
    theta = jnp.arccos(jnp.clip(logits, -1.0 + _CLIP, 1.0 - _CLIP))
    B = feats.shape[0]
    one_hot = jax.nn.one_hot(labels, W.shape[0], dtype=logits.dtype)
    b_avg = jnp.sum(jnp.where(one_hot < 1, jnp.exp(scale * logits), 0.0)) / B
    theta_target = theta[jnp.arange(B), labels]
    theta_med = jnp.sort(theta_target)[(B - 1) // 2]           # torch lower median
    new_scale = jnp.log(b_avg) / jnp.cos(jnp.minimum(jnp.pi / 4, theta_med))
    return new_scale * logits, new_scale


if __name__ == "__main__":
    B, FEAT_DIM, NUM_CLASSES = 16, 128, 512                    # small, lane-aligned

    key = jax.random.PRNGKey(0)
    k_feat, k_w, k_lab = jax.random.split(key, 3)

    feats = jax.random.normal(k_feat, (B, FEAT_DIM), jnp.float32)
    limit = math.sqrt(6.0 / (FEAT_DIM + NUM_CLASSES))          # xavier_uniform_
    W = jax.random.uniform(k_w, (NUM_CLASSES, FEAT_DIM), jnp.float32,
                           minval=-limit, maxval=limit)
    labels = jax.random.randint(k_lab, (B,), 0, NUM_CLASSES, jnp.int32)
    scale0 = math.sqrt(2.0) * math.log(NUM_CLASSES - 1)

    out, new_scale = adacos_forward(feats, W, labels, scale0)
    jax.block_until_ready((out, new_scale))
    assert out.shape == (B, NUM_CLASSES)

    # Loose-tolerance sanity check against the plain-JAX f32 reference
    # (kernel streams W in bf16, so compare with generous tolerances).
    ref_out, ref_scale = adacos_reference(feats, W, labels, scale0)
    cos_kernel = np.asarray(out) / float(new_scale)
    cos_ref = np.asarray(ref_out) / float(ref_scale)
    np.testing.assert_allclose(cos_kernel, cos_ref, atol=3e-2, rtol=0.0)
    np.testing.assert_allclose(float(new_scale), float(ref_scale),
                               rtol=5e-2, atol=1e-2)

    print("KERNEL_OK")
</pallas_src>

<mosaic_0001>
module attributes {stable_mosaic.version = 11 : i64} {
  func.func @_adacos_logits_kernel(%arg0: i32, %arg1: i32, %arg2: memref<1xf32, #tpu.memory_space<smem>>, %arg3: memref<16x128xf32, #tpu.memory_space<vmem>>, %arg4: memref<256x128xbf16, #tpu.memory_space<vmem>>, %arg5: memref<16x1xi32, #tpu.memory_space<vmem>>, %arg6: memref<16x256xf32, #tpu.memory_space<vmem>>, %arg7: memref<1x1x1xf32, #tpu.memory_space<vmem>>, %arg8: memref<1x16x1xf32, #tpu.memory_space<vmem>>) attributes {dimension_semantics = [#tpu.dimension_semantics<parallel>, #tpu.dimension_semantics<arbitrary>], iteration_bounds = array<i64: 2, 1>, scalar_prefetch = 0 : i64, scratch_operands = 0 : i64, tpu.core_type = #tpu.core_type<tc>, window_params = [{transform_indices = @transform_0, window_bounds = array<i64: 1>}, {pipeline_mode = #tpu.pipeline_mode<synchronous>, transform_indices = @transform_1, window_bounds = array<i64: 16, 128>}, {transform_indices = @transform_2, window_bounds = array<i64: 256, 128>}, {pipeline_mode = #tpu.pipeline_mode<synchronous>, transform_indices = @transform_3, window_bounds = array<i64: 16, 1>}, {transform_indices = @transform_4, window_bounds = array<i64: 16, 256>}, {transform_indices = @transform_5, window_bounds = array<i64: 1, 1, 1>}, {transform_indices = @transform_6, window_bounds = array<i64: 1, 16, 1>}]} {
    %c0_i32 = arith.constant 0 : i32
    %0 = arith.cmpi eq, %arg1, %c0_i32 : i32
    %1 = arith.extui %0 : i1 to i32
    %c0_i32_0 = arith.constant 0 : i32
    %2 = arith.cmpi ne, %1, %c0_i32_0 : i32
    scf.if %2 {
      %cst_31 = arith.constant 0.000000e+00 : f32
      %52 = vector.broadcast %cst_31 : f32 to vector<1x1x1xf32>
      %c0_32 = arith.constant 0 : index
      %c0_33 = arith.constant 0 : index
      %c0_34 = arith.constant 0 : index
      %53 = vector.load %arg7[%c0_32, %c0_33, %c0_34] : memref<1x1x1xf32, #tpu.memory_space<vmem>>, vector<1x1x1xf32>
      tpu.vector_store %arg7[%c0_32, %c0_33, %c0_34], %52 {strides = array<i32>} : memref<1x1x1xf32, #tpu.memory_space<vmem>>, vector<1x1x1xf32>,
      %cst_35 = arith.constant 0.000000e+00 : f32
      %54 = vector.broadcast %cst_35 : f32 to vector<1x16x1xf32>
      %c0_36 = arith.constant 0 : index
      %c0_37 = arith.constant 0 : index
      %c0_38 = arith.constant 0 : index
      %55 = vector.load %arg8[%c0_36, %c0_37, %c0_38] : memref<1x16x1xf32, #tpu.memory_space<vmem>>, vector<1x16x1xf32>
      tpu.vector_store %arg8[%c0_36, %c0_37, %c0_38], %54 {strides = array<i32>} : memref<1x16x1xf32, #tpu.memory_space<vmem>>, vector<1x16x1xf32>,
    } else {
    }
    %c0 = arith.constant 0 : index
    %c0_1 = arith.constant 0 : index
    %3 = vector.load %arg4[%c0, %c0_1] : memref<256x128xbf16, #tpu.memory_space<vmem>>, vector<256x128xbf16>
    %4 = arith.extf %3 : vector<256x128xbf16> to vector<256x128xf32>
    %5 = arith.mulf %4, %4 : vector<256x128xf32>
    %cst = arith.constant dense<0.000000e+00> : vector<256xf32>
    %6 = vector.multi_reduction <add>, %5, %cst [1] : vector<256x128xf32> to vector<256xf32>
    %7 = vector.shape_cast %6 : vector<256xf32> to vector<256x1xf32>
    %cst_2 = arith.constant 1.000000e-24 : f32
    %8 = vector.broadcast %cst_2 : f32 to vector<256x1xf32>
    %9 = arith.maximumf %7, %8 : vector<256x1xf32>
    %10 = math.rsqrt %9 : vector<256x1xf32>
    %11 = vector.broadcast %10 : vector<256x1xf32> to vector<256x128xf32>
    %12 = arith.mulf %4, %11 : vector<256x128xf32>
    %c0_3 = arith.constant 0 : index
    %c0_4 = arith.constant 0 : index
    %13 = vector.load %arg3[%c0_3, %c0_4] : memref<16x128xf32, #tpu.memory_space<vmem>>, vector<16x128xf32>
    %cst_5 = arith.constant dense<0.000000e+00> : vector<16x256xf32>
    %14 = tpu.matmul %13, %12, %cst_5 {dimension_numbers = #tpu.dot_dimension_numbers<[1], [1], [0], [0], [0, 0, 1, 0], [], []>} : vector<16x128xf32>, vector<256x128xf32>, vector<16x256xf32> -> vector<16x256xf32>
    %c0_6 = arith.constant 0 : index
    %c0_7 = arith.constant 0 : index
    %15 = vector.load %arg6[%c0_6, %c0_7] : memref<16x256xf32, #tpu.memory_space<vmem>>, vector<16x256xf32>
    tpu.vector_store %arg6[%c0_6, %c0_7], %14 {strides = array<i32>} : memref<16x256xf32, #tpu.memory_space<vmem>>, vector<16x256xf32>,
    %c1_i32 = arith.constant 1 : i32
    %16 = arith.muli %arg0, %c1_i32 : i32
    %17 = arith.addi %16, %arg1 : i32
    %c256_i32 = arith.constant 256 : i32
    %18 = arith.muli %17, %c256_i32 : i32
    %19 = tpu.iota {dimensions = array<i32: 1>} : vector<16x256xi32>
    %20 = vector.broadcast %18 : i32 to vector<16x256xi32>
    %21 = arith.addi %19, %20 : vector<16x256xi32>
    %c0_8 = arith.constant 0 : index
    %c0_9 = arith.constant 0 : index
    %22 = vector.load %arg5[%c0_8, %c0_9] : memref<16x1xi32, #tpu.memory_space<vmem>>, vector<16x1xi32>
    %23 = vector.broadcast %22 : vector<16x1xi32> to vector<16x256xi32>
    %24 = arith.cmpi eq, %21, %23 : vector<16x256xi32>
    %c0_10 = arith.constant 0 : index
    %25 = memref.load %arg2[%c0_10] : memref<1xf32, #tpu.memory_space<smem>>
    %26 = vector.broadcast %25 : f32 to vector<16x256xf32>
    %27 = arith.mulf %26, %14 : vector<16x256xf32>
    %28 = math.exp %27 : vector<16x256xf32>
    %cst_11 = arith.constant dense<true> : vector<16x256xi1>
    %29 = arith.xori %24, %cst_11 : vector<16x256xi1>
    %cst_12 = arith.constant 0.000000e+00 : f32
    %30 = vector.broadcast %cst_12 : f32 to vector<16x256xf32>
    %31 = arith.select %29, %28, %30 : vector<16x256xi1>, vector<16x256xf32>
    %cst_13 = arith.constant dense<0.000000e+00> : vector<16xf32>
    %32 = vector.multi_reduction <add>, %31, %cst_13 [1] : vector<16x256xf32> to vector<16xf32>
    %33 = vector.shape_cast %32 : vector<16xf32> to vector<16x1xf32>
    %c0_14 = arith.constant 0 : index
    %c0_15 = arith.constant 0 : index
    %c0_16 = arith.constant 0 : index
    %34 = vector.load %arg7[%c0_14, %c0_15, %c0_16] : memref<1x1x1xf32, #tpu.memory_space<vmem>>, vector<1x1x1xf32>
    %cst_17 = arith.constant dense<0.000000e+00> : vector<1xf32>
    %35 = vector.multi_reduction <add>, %33, %cst_17 [0] : vector<16x1xf32> to vector<1xf32>
    %36 = vector.shape_cast %35 : vector<1xf32> to vector<1x1xf32>
    %37 = vector.shape_cast %36 : vector<1x1xf32> to vector<1x1x1xf32>
    %38 = arith.addf %34, %37 : vector<1x1x1xf32>
    %c0_18 = arith.constant 0 : index
    %c0_19 = arith.constant 0 : index
    %c0_20 = arith.constant 0 : index
    %39 = vector.load %arg7[%c0_18, %c0_19, %c0_20] : memref<1x1x1xf32, #tpu.memory_space<vmem>>, vector<1x1x1xf32>
    tpu.vector_store %arg7[%c0_18, %c0_19, %c0_20], %38 {strides = array<i32>} : memref<1x1x1xf32, #tpu.memory_space<vmem>>, vector<1x1x1xf32>,
    %cst_21 = arith.constant -0.99999988 : f32
    %cst_22 = arith.constant 0.99999988 : f32
    %40 = vector.broadcast %cst_21 : f32 to vector<16x256xf32>
    %41 = arith.maximumf %40, %14 : vector<16x256xf32>
    %42 = vector.broadcast %cst_22 : f32 to vector<16x256xf32>
    %43 = arith.minimumf %42, %41 : vector<16x256xf32>
    %cst_23 = arith.constant 0.000000e+00 : f32
    %44 = vector.broadcast %cst_23 : f32 to vector<16x256xf32>
    %45 = arith.select %24, %43, %44 : vector<16x256xi1>, vector<16x256xf32>
    %cst_24 = arith.constant dense<0.000000e+00> : vector<16xf32>
    %46 = vector.multi_reduction <add>, %45, %cst_24 [1] : vector<16x256xf32> to vector<16xf32>
    %47 = vector.shape_cast %46 : vector<16xf32> to vector<16x1xf32>
    %c0_25 = arith.constant 0 : index
    %c0_26 = arith.constant 0 : index
    %c0_27 = arith.constant 0 : index
    %48 = vector.load %arg8[%c0_25, %c0_26, %c0_27] : memref<1x16x1xf32, #tpu.memory_space<vmem>>, vector<1x16x1xf32>
    %49 = vector.shape_cast %47 : vector<16x1xf32> to vector<1x16x1xf32>
    %50 = arith.addf %48, %49 : vector<1x16x1xf32>
    %c0_28 = arith.constant 0 : index
    %c0_29 = arith.constant 0 : index
    %c0_30 = arith.constant 0 : index
    %51 = vector.load %arg8[%c0_28, %c0_29, %c0_30] : memref<1x16x1xf32, #tpu.memory_space<vmem>>, vector<1x16x1xf32>
    tpu.vector_store %arg8[%c0_28, %c0_29, %c0_30], %50 {strides = array<i32>} : memref<1x16x1xf32, #tpu.memory_space<vmem>>, vector<1x16x1xf32>,
    return
  }
  func.func @transform_0(%arg0: i32, %arg1: i32) -> i32 {
    %c0_i32 = arith.constant 0 : i32
    %c0_i32_0 = arith.constant 0 : i32
    return %c0_i32 : i32
  }
  func.func @transform_1(%arg0: i32, %arg1: i32) -> (i32, i32) {
    %c0_i32 = arith.constant 0 : i32
    %c0_i32_0 = arith.constant 0 : i32
    %c0_i32_1 = arith.constant 0 : i32
    return %c0_i32, %c0_i32_0 : i32, i32
  }
  func.func @transform_2(%arg0: i32, %arg1: i32) -> (i32, i32) {
    %c1_i32 = arith.constant 1 : i32
    %0 = arith.muli %arg0, %c1_i32 : i32
    %1 = arith.addi %0, %arg1 : i32
    %c0_i32 = arith.constant 0 : i32
    %c0_i32_0 = arith.constant 0 : i32
    return %1, %c0_i32 : i32, i32
  }
  func.func @transform_3(%arg0: i32, %arg1: i32) -> (i32, i32) {
    %c0_i32 = arith.constant 0 : i32
    %c0_i32_0 = arith.constant 0 : i32
    %c0_i32_1 = arith.constant 0 : i32
    return %c0_i32, %c0_i32_0 : i32, i32
  }
  func.func @transform_4(%arg0: i32, %arg1: i32) -> (i32, i32) {
    %c1_i32 = arith.constant 1 : i32
    %0 = arith.muli %arg0, %c1_i32 : i32
    %1 = arith.addi %0, %arg1 : i32
    %c0_i32 = arith.constant 0 : i32
    %c0_i32_0 = arith.constant 0 : i32
    return %c0_i32, %1 : i32, i32
  }
  func.func @transform_5(%arg0: i32, %arg1: i32) -> (i32, i32, i32) {
    %c0_i32 = arith.constant 0 : i32
    %c0_i32_0 = arith.constant 0 : i32
    %c0_i32_1 = arith.constant 0 : i32
    return %arg0, %c0_i32, %c0_i32_0 : i32, i32, i32
  }
  func.func @transform_6(%arg0: i32, %arg1: i32) -> (i32, i32, i32) {
    %c0_i32 = arith.constant 0 : i32
    %c0_i32_0 = arith.constant 0 : i32
    %c0_i32_1 = arith.constant 0 : i32
    return %arg0, %c0_i32, %c0_i32_0 : i32, i32, i32
  }
}

</mosaic_0001>

<llo_original>
// kernel: tpu_custom_call.1
$region0: #{tpu_custom_call.1}
  #allocation0 [shape = 'u32[]', space=smem, size = 0x4, offset = 0x4, fixed_abs, tag = 'smem constant byte address 0x4 - core index']
  #allocation1 [shape = 'u32[72,128]{1,0:T(1,128)}', space=vmem, size = 0x9000, scoped, tag = 'internal scratch']
  #allocation2 [shape = 'f32[1]{0:T(128)S(6)}', space=smem, size = 0x200, scoped, tag = 'scoped memory for tpu_custom_call.1']
  %s0 = inlined_call_operand.<no memory space> [shape: f32[1], index: 0, kind: input, shape index: {}]
  %s1 = inlined_call_operand.vmem [shape: f32[16,128], index: 1, kind: input, shape index: {}]
  %s2 = inlined_call_operand.hbm [shape: bf16[512,128], index: 2, kind: input, shape index: {}]
  %s3 = inlined_call_operand.vmem [shape: s32[16,1], index: 3, kind: input, shape index: {}]
  %s4 = inlined_call_operand.hbm [shape: f32[16,512], index: 4, kind: output, shape index: {0}]
  %s5 = inlined_call_operand.vmem [shape: f32[2,1,1], index: 5, kind: output, shape index: {1}]
  %s6 = inlined_call_operand.vmem [shape: f32[2,16,1], index: 6, kind: output, shape index: {2}]
  %7 = xla_tuple %s4, %s5, %s6
  %s8 = sld [smem:[#allocation0]]
  $region73: #{tpu_custom_call.1} parent=0
    _
  %s10 = ssub.s32 1, %s8
  %s11 = scalar_select 0, %s10, %s8
  %12 = sst [smem:[#allocation2]] %s0
  $region1: #{tpu_custom_call.1} parent=0
    #allocation3 [shape = 'u8[131072]{0}', space=vmem, size = 0x20000, scoped, tag = 'input window, operand 2']
    #allocation4 [shape = 's32[2]{0}', space=sflag, size = 0x8, scoped, tag = 'scoped memory for tpu_custom_call.1']
    #allocation5 [shape = 's32[2]{0}', space=sflag, size = 0x8, scoped, tag = 'scoped memory for tpu_custom_call.1']
    #allocation6 [shape = 'u8[32768]{0}', space=vmem, size = 0x8000, scoped, tag = 'output window, operand 0']
    %13 = vsyncpa [#allocation4], 0
    %s14 = scalar_lea.sflag [#allocation4], 1
    %15 = vsyncpa %s14, 0
    %16 = vsyncpa [#allocation5], 0
    %s17 = scalar_lea.sflag [#allocation5], 1
    %18 = vsyncpa %s17, 0
    loop: start=0, step=1, limit=4
    $region2: #{tpu_custom_call.1} parent=1 // loop_pre_header
      _
    $region3: #{tpu_custom_call.1} parent=1 // loop_header
      %s20 = sphi 0, %s24
      %p21 = scmp.ge.s32.totalorder %s20, 4
      %s27 = sphi 0, %s39
      %s28 = sphi 0, %s35
      %s29 = sphi 0, %s27
      %s30 = sphi 0, %s28
      %s31 = sphi 0, %s29
      %s32 = sphi 0, %s30
      %s40 = sphi 0, %s40
      %s42 = sphi 0, %s40
      %s43 = sphi 0, %s42
      %s57 = sphi 0, %s43
      %s61 = sphi 0, %s61
      %s63 = sphi 0, %s61
      %s64 = sphi 0, %s63
      %s78 = sphi 0, %s64
      %s86 = sphi 0, %s88
      %s89 = sphi 0, %s86
      %s90 = sphi 0, %s89
      %s106 = sphi 0, %s90
      %s110 = sphi 0, %s110
      %s112 = sphi 0, %s110
      %s113 = sphi 0, %s112
      %s127 = sphi 0, %s113
      %s135 = sphi 0, %s137
      %s138 = sphi 0, %s135
      %s139 = sphi 0, %s138
      %s155 = sphi 0, %s139
      %s161 = sphi 0, %s163
      %s164 = sphi 0, %s161
      %s165 = sphi 0, %s164
      %s181 = sphi 0, %s165
      %s187 = sphi 0, %s189
      %s190 = sphi 0, %s187
      %s191 = sphi 0, %s190
      %s207 = sphi 0, %s191
    $region4: #{tpu_custom_call.1} parent=1 // loop_header_branch
      %23 = sbr.rel (%p21) target = $region8
    $region5: #{tpu_custom_call.1} parent=1 // loop_body
      %s25 = ssub.s32 %s20, 1
      %s26 = ssub.s32 %s20, 2
      %s33 = sadd.s32 1, %s28
      %p34 = scmp.ge.s32.totalorder %s33, 1
      %s35 = scalar_select %p34, 0, %s33
      %s36 = sadd.s32 1, %s27
      %s37 = scalar_select %p34, %s36, %s27
      %p38 = scmp.ge.s32.totalorder %s37, 2
      %s39 = scalar_select %p38, 0, %s37
      %s41 = sadd.s32 %s40, 1
      %p44 = scmp.eq.s32.totalorder %s20, 1
      %p45 = scmp.ne.s32.totalorder %s40, %s42
      %p46 = scmp.eq.s32.totalorder %s20, 0
      %p47 = por %p45, %p46
      %p48 = scmp.ne.s32.totalorder %s40, %s42
      %p49 = scmp.eq.s32.totalorder %s25, 1
      %p50 = por %p48, %p49
      %p51 = scmp.ne.s32.totalorder %s42, %s43
      %p52 = scmp.eq.s32.totalorder %s25, 0
      %p53 = por %p51, %p52
      %p54 = scmp.ne.s32.totalorder %s42, %s43
      %p55 = scmp.eq.s32.totalorder %s26, 1
      %p56 = por %p54, %p55
      %p58 = scmp.ne.s32.totalorder %s43, %s57
      %p59 = scmp.eq.s32.totalorder %s26, 0
      %p60 = por %p58, %p59
      %s62 = sadd.s32 %s61, 1
      %p65 = scmp.eq.s32.totalorder %s20, 1
      %p66 = scmp.ne.s32.totalorder %s61, %s63
      %p67 = scmp.eq.s32.totalorder %s20, 0
      %p68 = por %p66, %p67
      %p69 = scmp.ne.s32.totalorder %s61, %s63
      %p70 = scmp.eq.s32.totalorder %s25, 1
      %p71 = por %p69, %p70
      %p72 = scmp.ne.s32.totalorder %s63, %s64
      %p73 = scmp.eq.s32.totalorder %s25, 0
      %p74 = por %p72, %p73
      %p75 = scmp.ne.s32.totalorder %s63, %s64
      %p76 = scmp.eq.s32.totalorder %s26, 1
      %p77 = por %p75, %p76
      %p79 = scmp.ne.s32.totalorder %s64, %s78
      %p80 = scmp.eq.s32.totalorder %s26, 0
      %p81 = por %p79, %p80
      %s82 = sadd.s32 %s27, %s28
      %s83 = sadd.s32 %s39, %s35
      %s84 = ssub.s32 %s82, %s83
      %p85 = scmp.eq.s32.totalorder %s84, 0
      %s87 = sadd.s32 %s86, 1
      %s88 = scalar_select %p85, %s86, %s87
      %p91 = pneg %p85
      %p92 = scmp.eq.s32.totalorder %s20, 1
      %p93 = por %p91, %p92
      %p94 = scmp.ne.s32.totalorder %s86, %s89
      %p95 = scmp.eq.s32.totalorder %s20, 0
      %p96 = por %p94, %p95
      %p97 = scmp.ne.s32.totalorder %s86, %s89
      %p98 = scmp.eq.s32.totalorder %s25, 1
      %p99 = por %p97, %p98
      %p100 = scmp.ne.s32.totalorder %s89, %s90
      %p101 = scmp.eq.s32.totalorder %s25, 0
      %p102 = por %p100, %p101
      %p103 = scmp.ne.s32.totalorder %s89, %s90
      %p104 = scmp.eq.s32.totalorder %s26, 1
      %p105 = por %p103, %p104
      %p107 = scmp.ne.s32.totalorder %s90, %s106
      %p108 = scmp.eq.s32.totalorder %s26, 0
      %p109 = por %p107, %p108
      %s111 = sadd.s32 %s110, 1
      %p114 = scmp.eq.s32.totalorder %s20, 1
      %p115 = scmp.ne.s32.totalorder %s110, %s112
      %p116 = scmp.eq.s32.totalorder %s20, 0
      %p117 = por %p115, %p116
      %p118 = scmp.ne.s32.totalorder %s110, %s112
      %p119 = scmp.eq.s32.totalorder %s25, 1
      %p120 = por %p118, %p119
      %p121 = scmp.ne.s32.totalorder %s112, %s113
      %p122 = scmp.eq.s32.totalorder %s25, 0
      %p123 = por %p121, %p122
      %p124 = scmp.ne.s32.totalorder %s112, %s113
      %p125 = scmp.eq.s32.totalorder %s26, 1
      %p126 = por %p124, %p125
      %p128 = scmp.ne.s32.totalorder %s113, %s127
      %p129 = scmp.eq.s32.totalorder %s26, 0
      %p130 = por %p128, %p129
      %s131 = sadd.s32 %s27, %s28
      %s132 = sadd.s32 %s39, %s35
      %s133 = ssub.s32 %s131, %s132
      %p134 = scmp.eq.s32.totalorder %s133, 0
      %s136 = sadd.s32 %s135, 1
      %s137 = scalar_select %p134, %s135, %s136
      %p140 = pneg %p134
      %p141 = scmp.eq.s32.totalorder %s20, 1
      %p142 = por %p140, %p141
      %p143 = scmp.ne.s32.totalorder %s135, %s138
      %p144 = scmp.eq.s32.totalorder %s20, 0
      %p145 = por %p143, %p144
      %p146 = scmp.ne.s32.totalorder %s135, %s138
      %p147 = scmp.eq.s32.totalorder %s25, 1
      %p148 = por %p146, %p147
      %p149 = scmp.ne.s32.totalorder %s138, %s139
      %p150 = scmp.eq.s32.totalorder %s25, 0
      %p151 = por %p149, %p150
      %p152 = scmp.ne.s32.totalorder %s138, %s139
      %p153 = scmp.eq.s32.totalorder %s26, 1
      %p154 = por %p152, %p153
      %p156 = scmp.ne.s32.totalorder %s139, %s155
      %p157 = scmp.eq.s32.totalorder %s26, 0
      %p158 = por %p156, %p157
      %s159 = ssub.s32 %s27, %s39
      %p160 = scmp.eq.s32.totalorder %s159, 0
      %s162 = sadd.s32 %s161, 1
      %s163 = scalar_select %p160, %s161, %s162
      %p166 = pneg %p160
      %p167 = scmp.eq.s32.totalorder %s20, 1
      %p168 = por %p166, %p167
      %p169 = scmp.ne.s32.totalorder %s161, %s164
      %p170 = scmp.eq.s32.totalorder %s20, 0
      %p171 = por %p169, %p170
      %p172 = scmp.ne.s32.totalorder %s161, %s164
      %p173 = scmp.eq.s32.totalorder %s25, 1
      %p174 = por %p172, %p173
      %p175 = scmp.ne.s32.totalorder %s164, %s165
      %p176 = scmp.eq.s32.totalorder %s25, 0
      %p177 = por %p175, %p176
      %p178 = scmp.ne.s32.totalorder %s164, %s165
      %p179 = scmp.eq.s32.totalorder %s26, 1
      %p180 = por %p178, %p179
      %p182 = scmp.ne.s32.totalorder %s165, %s181
      %p183 = scmp.eq.s32.totalorder %s26, 0
      %p184 = por %p182, %p183
      %s185 = ssub.s32 %s27, %s39
      %p186 = scmp.eq.s32.totalorder %s185, 0
      %s188 = sadd.s32 %s187, 1
      %s189 = scalar_select %p186, %s187, %s188
      %p192 = pneg %p186
      %p193 = scmp.eq.s32.totalorder %s20, 1
      %p194 = por %p192, %p193
      %p195 = scmp.ne.s32.totalorder %s187, %s190
      %p196 = scmp.eq.s32.totalorder %s20, 0
      %p197 = por %p195, %p196
      %p198 = scmp.ne.s32.totalorder %s187, %s190
      %p199 = scmp.eq.s32.totalorder %s25, 1
      %p200 = por %p198, %p199
      %p201 = scmp.ne.s32.totalorder %s190, %s191
      %p202 = scmp.eq.s32.totalorder %s25, 0
      %p203 = por %p201, %p202
      %p204 = scmp.ne.s32.totalorder %s190, %s191
      %p205 = scmp.eq.s32.totalorder %s26, 1
      %p206 = por %p204, %p205
      %p208 = scmp.ne.s32.totalorder %s191, %s207
      %p209 = scmp.eq.s32.totalorder %s26, 0
      %p210 = por %p208, %p209
      %p211 = scmp.le.s32.totalorder 1, %s20
      %p212 = scmp.lt.s32.totalorder %s20, 3
      %p213 = pnand %p211, %p212
      %p214 = pneg %p213
      // Predicated region
      $region9: #{tpu_custom_call.1} parent=5 // pred_check
        _
      $region10: #{tpu_custom_call.1} parent=5 // pred_check_branch
        %216 = sbr.rel (%p213) target = $region12
      $region11: #{tpu_custom_call.1} parent=5 // pred_region
        %s217 = ssub.s32 %s20, 1
        // Predicated region
        $region13: #{tpu_custom_call.1} parent=11 // pred_check
          %p218 = pneg %p53
        $region14: #{tpu_custom_call.1} parent=11 // pred_check_branch
          %220 = sbr.rel (%p218) target = $region16
        $region15: #{tpu_custom_call.1} parent=11 // pred_region
          _
        $region16: #{tpu_custom_call.1} parent=11 // pred_fallthru
          _
        // Predicated region
        $region17: #{tpu_custom_call.1} parent=11 // pred_check
          %p221 = pneg %p74
        $region18: #{tpu_custom_call.1} parent=11 // pred_check_branch
          %223 = sbr.rel (%p221) target = $region20
        $region19: #{tpu_custom_call.1} parent=11 // pred_region
          _
        $region20: #{tpu_custom_call.1} parent=11 // pred_fallthru
          _
        // Predicated region
        $region21: #{tpu_custom_call.1} parent=11 // pred_check
          %p224 = pneg %p123
        $region22: #{tpu_custom_call.1} parent=11 // pred_check_branch
          %226 = sbr.rel (%p224) target = $region24
        $region23: #{tpu_custom_call.1} parent=11 // pred_region
          _
        $region24: #{tpu_custom_call.1} parent=11 // pred_fallthru
          _
      $region12: #{tpu_custom_call.1} parent=5 // pred_fallthru
        _
      %p227 = scmp.lt.s32.totalorder %s20, 2
      // Predicated region
      $region25: #{tpu_custom_call.1} parent=5 // pred_check
        %p228 = pneg %p227
      $region26: #{tpu_custom_call.1} parent=5 // pred_check_branch
        %230 = sbr.rel (%p228) target = $region28
      $region27: #{tpu_custom_call.1} parent=5 // pred_region
        // Predicated region
        $region29: #{tpu_custom_call.1} parent=27 // pred_check
          %p231 = pneg %p96
        $region30: #{tpu_custom_call.1} parent=27 // pred_check_branch
          %233 = sbr.rel (%p231) target = $region32
        $region31: #{tpu_custom_call.1} parent=27 // pred_region
          %s234 = sand.u32 %s86, 1
          %s235 = scalar_lea.sflag [#allocation4], %s234
          %s236 = sand.u32 %s86, 1
          %s237 = smul.addr %s236, 128
          %s238 = scalar_lea.vmem [#allocation3], %s237
          %s239 = sadd.s32 %s27, %s28
          %s240 = smul.u32 32, %s239
          %242 = vsyncadd %s235, 0
          %s243 = smul.addr %s240, 4
          %s244 = scalar_lea.hbm %s2, %s243
          %s245 = sshll.u32 %s244, 4
          %s246 = int_to_ptr.hbm [resolvable:$true] %s245
          %s247 = sshll.u32 %s238, 4
          %s248 = int_to_ptr.vmem [resolvable:$true] %s247
          %253 = dma.hbm_to_vmem [thread:$0]  %s246, 2048, %s248, %s235, 64, 64, 4
        $region32: #{tpu_custom_call.1} parent=27 // pred_fallthru
          _
      $region28: #{tpu_custom_call.1} parent=5 // pred_fallthru
        _
      %p254 = scmp.le.s32.totalorder 1, %s20
      %p255 = scmp.lt.s32.totalorder %s20, 3
      %p256 = pnand %p254, %p255
      %p257 = pneg %p256
      // Predicated region
      $region33: #{tpu_custom_call.1} parent=5 // pred_check
        _
      $region34: #{tpu_custom_call.1} parent=5 // pred_check_branch
        %259 = sbr.rel (%p256) target = $region36
      $region35: #{tpu_custom_call.1} parent=5 // pred_region
        %s260 = ssub.s32 %s20, 1
        %s261 = sand.u32 %s89, 1
        %s262 = scalar_lea.sflag [#allocation4], %s261
        %s263 = sand.u32 %s89, 1
        %s264 = smul.addr %s263, 128
        %s265 = scalar_lea.vmem [#allocation3], %s264
        // Predicated region
        $region37: #{tpu_custom_call.1} parent=35 // pred_check
          %p266 = pneg %p102
        $region38: #{tpu_custom_call.1} parent=35 // pred_check_branch
          %268 = sbr.rel (%p266) target = $region40
        $region39: #{tpu_custom_call.1} parent=35 // pred_region
          %270 = dma.done %s262, 2048
        $region40: #{tpu_custom_call.1} parent=35 // pred_fallthru
          _
        %p271 = pneg %p53
        %p272 = pneg %p50
        %p273 = pneg %p74
        %p274 = pneg %p71
        %s275 = sand.u32 %s89, 1
        %s276 = scalar_lea.sflag [#allocation4], %s275
        %s277 = sand.u32 %s89, 1
        %s278 = smul.addr %s277, 128
        %s279 = scalar_lea.vmem [#allocation3], %s278
        %p280 = pneg %p102
        %p281 = pneg %p99
        %p282 = pneg %p123
        %p283 = pneg %p120
        %p284 = pneg %p151
        %p285 = pneg %p148
        %s286 = sand.u32 %s138, 1
        %s287 = scalar_lea.sflag [#allocation5], %s286
        %s288 = sand.u32 %s138, 1
        %s289 = smul.addr %s288, 32
        %s290 = scalar_lea.vmem [#allocation6], %s289
        %p291 = pneg %p177
        %p292 = pneg %p174
        %p293 = scmp.lt.s32.totalorder %s29, 1
        %s294 = scalar_select %p293, %s29, 1
        %s295 = scalar_lea.vmem %s5, %s294
        %p296 = pneg %p203
        %p297 = pneg %p200
        %p298 = scmp.lt.s32.totalorder %s29, 1
        %s299 = scalar_select %p298, %s29, 1
        %s300 = smul.addr %s299, 2
        %s301 = smul.addr %s300, 8
        %s302 = scalar_lea.vmem %s6, %s301
        %s303 = sadd.s32 %s29, %s30
        %s304 = smul.u32 32, %s303
        %s305 = sadd.s32 %s29, %s30
        %s306 = smul.u32 2, %s305
        %p307 = scmp.lt.s32.totalorder %s29, 1
        %s308 = scalar_select %p307, %s29, 1
        %s309 = scalar_lea.vmem %s5, %s308
        %p310 = scmp.lt.s32.totalorder %s29, 1
        %s311 = scalar_select %p310, %s29, 1
        %s312 = smul.addr %s311, 2
        %s313 = smul.addr %s312, 8
        %s314 = scalar_lea.vmem %s6, %s313
        %p315 = scmp.eq.s32.totalorder %s30, 0
        // Predicated region
        $region41: #{tpu_custom_call.1} parent=35 // pred_check
          %p316 = pneg %p315
        $region42: #{tpu_custom_call.1} parent=35 // pred_check_branch
          %318 = sbr.rel (%p316) target = $region44
        $region43: #{tpu_custom_call.1} parent=35 // pred_region
          %vm319 = vcmask 0
          %320 = vst.msk [vmem:[%s309] sm:$0x1] %vm319, 0.0
          %vm321 = vcmask 7168
          %322 = vst.msk [vmem:[%s314] sm:$0xff] %vm321, 0.0
          %323 = vst.msk [vmem:[%s314 + $0x8] sm:$0xff] %vm321, 0.0
        $region44: #{tpu_custom_call.1} parent=35 // pred_fallthru
          _
        %v324 = vld [vmem:[%s265] sm:$0xf]
        %v325 = vld [vmem:[%s265 + $0x4] sm:$0xf]
        %v326 = vld [vmem:[%s265 + $0x8] sm:$0xf]
        %v327 = vld [vmem:[%s265 + $0xc] sm:$0xf]
        %v328 = vld [vmem:[%s265 + $0x10] sm:$0xf]
        %v329 = vld [vmem:[%s265 + $0x14] sm:$0xf]
        %v330 = vld [vmem:[%s265 + $0x18] sm:$0xf]
        %v331 = vld [vmem:[%s265 + $0x1c] sm:$0xf]
        %v332 = vld [vmem:[%s265 + $0x20] sm:$0xf]
        %v333 = vld [vmem:[%s265 + $0x24] sm:$0xf]
        %v334 = vld [vmem:[%s265 + $0x28] sm:$0xf]
        %v335 = vld [vmem:[%s265 + $0x2c] sm:$0xf]
        %v336 = vld [vmem:[%s265 + $0x30] sm:$0xf]
        %v337 = vld [vmem:[%s265 + $0x34] sm:$0xf]
        %v338 = vld [vmem:[%s265 + $0x38] sm:$0xf]
        %v339 = vld [vmem:[%s265 + $0x3c] sm:$0xf]
        %v340 = vld [vmem:[%s265 + $0x40] sm:$0xf]
        %v341 = vld [vmem:[%s265 + $0x44] sm:$0xf]
        %v342 = vld [vmem:[%s265 + $0x48] sm:$0xf]
        %v343 = vld [vmem:[%s265 + $0x4c] sm:$0xf]
        %v344 = vld [vmem:[%s265 + $0x50] sm:$0xf]
        %v345 = vld [vmem:[%s265 + $0x54] sm:$0xf]
        %v346 = vld [vmem:[%s265 + $0x58] sm:$0xf]
        %v347 = vld [vmem:[%s265 + $0x5c] sm:$0xf]
        %v348 = vld [vmem:[%s265 + $0x60] sm:$0xf]
        %v349 = vld [vmem:[%s265 + $0x64] sm:$0xf]
        %v350 = vld [vmem:[%s265 + $0x68] sm:$0xf]
        %v351 = vld [vmem:[%s265 + $0x6c] sm:$0xf]
        %v352 = vld [vmem:[%s265 + $0x70] sm:$0xf]
        %v353 = vld [vmem:[%s265 + $0x74] sm:$0xf]
        %v354 = vld [vmem:[%s265 + $0x78] sm:$0xf]
        %v355 = vld [vmem:[%s265 + $0x7c] sm:$0xf]
        %v356 = vunpack.c.l.bf16 %v324
        %v357 = vunpack.c.l.bf16 %v325
        %v358 = vunpack.c.l.bf16 %v326
        %v359 = vunpack.c.l.bf16 %v327
        %v360 = vunpack.c.l.bf16 %v328
        %v361 = vunpack.c.l.bf16 %v329
        %v362 = vunpack.c.l.bf16 %v330
        %v363 = vunpack.c.l.bf16 %v331
        %v364 = vunpack.c.l.bf16 %v332
        %v365 = vunpack.c.l.bf16 %v333
        %v366 = vunpack.c.l.bf16 %v334
        %v367 = vunpack.c.l.bf16 %v335
        %v368 = vunpack.c.l.bf16 %v336
        %v369 = vunpack.c.l.bf16 %v337
        %v370 = vunpack.c.l.bf16 %v338
        %v371 = vunpack.c.l.bf16 %v339
        %v372 = vunpack.c.l.bf16 %v340
        %v373 = vunpack.c.l.bf16 %v341
        %v374 = vunpack.c.l.bf16 %v342
        %v375 = vunpack.c.l.bf16 %v343
        %v376 = vunpack.c.l.bf16 %v344
        %v377 = vunpack.c.l.bf16 %v345
        %v378 = vunpack.c.l.bf16 %v346
        %v379 = vunpack.c.l.bf16 %v347
        %v380 = vunpack.c.l.bf16 %v348
        %v381 = vunpack.c.l.bf16 %v349
        %v382 = vunpack.c.l.bf16 %v350
        %v383 = vunpack.c.l.bf16 %v351
        %v384 = vunpack.c.l.bf16 %v352
        %v385 = vunpack.c.l.bf16 %v353
        %v386 = vunpack.c.l.bf16 %v354
        %v387 = vunpack.c.l.bf16 %v355
        %v388 = vmul.f32 %v356, %v356
        %v389 = vmul.f32 %v357, %v357
        %v390 = vmul.f32 %v358, %v358
        %v391 = vmul.f32 %v359, %v359
        %v392 = vmul.f32 %v360, %v360
        %v393 = vmul.f32 %v361, %v361
        %v394 = vmul.f32 %v362, %v362
        %v395 = vmul.f32 %v363, %v363
        %v396 = vmul.f32 %v364, %v364
        %v397 = vmul.f32 %v365, %v365
        %v398 = vmul.f32 %v366, %v366
        %v399 = vmul.f32 %v367, %v367
        %v400 = vmul.f32 %v368, %v368
        %v401 = vmul.f32 %v369, %v369
        %v402 = vmul.f32 %v370, %v370
        %v403 = vmul.f32 %v371, %v371
        %v404 = vmul.f32 %v372, %v372
        %v405 = vmul.f32 %v373, %v373
        %v406 = vmul.f32 %v374, %v374
        %v407 = vmul.f32 %v375, %v375
        %v408 = vmul.f32 %v376, %v376
        %v409 = vmul.f32 %v377, %v377
        %v410 = vmul.f32 %v378, %v378
        %v411 = vmul.f32 %v379, %v379
        %v412 = vmul.f32 %v380, %v380
        %v413 = vmul.f32 %v381, %v381
        %v414 = vmul.f32 %v382, %v382
        %v415 = vmul.f32 %v383, %v383
        %v416 = vmul.f32 %v384, %v384
        %v417 = vmul.f32 %v385, %v385
        %v418 = vmul.f32 %v386, %v386
        %v419 = vmul.f32 %v387, %v387
        %420 = vadd.xlane.f32.xlu0 %v388
        %v421 = vpop.xlane.xlu0 %420
        %422 = vadd.xlane.f32.xlu0 %v389
        %v423 = vpop.xlane.xlu0 %422
        %424 = vadd.xlane.f32.xlu0 %v390
        %v425 = vpop.xlane.xlu0 %424
        %426 = vadd.xlane.f32.xlu0 %v391
        %v427 = vpop.xlane.xlu0 %426
        %428 = vadd.xlane.f32.xlu0 %v392
        %v429 = vpop.xlane.xlu0 %428
        %430 = vadd.xlane.f32.xlu0 %v393
        %v431 = vpop.xlane.xlu0 %430
        %432 = vadd.xlane.f32.xlu0 %v394
        %v433 = vpop.xlane.xlu0 %432
        %434 = vadd.xlane.f32.xlu0 %v395
        %v435 = vpop.xlane.xlu0 %434
        %436 = vadd.xlane.f32.xlu0 %v396
        %v437 = vpop.xlane.xlu0 %436
        %438 = vadd.xlane.f32.xlu0 %v397
        %v439 = vpop.xlane.xlu0 %438
        %440 = vadd.xlane.f32.xlu0 %v398
        %v441 = vpop.xlane.xlu0 %440
        %442 = vadd.xlane.f32.xlu0 %v399
        %v443 = vpop.xlane.xlu0 %442
        %444 = vadd.xlane.f32.xlu0 %v400
        %v445 = vpop.xlane.xlu0 %444
        %446 = vadd.xlane.f32.xlu0 %v401
        %v447 = vpop.xlane.xlu0 %446
        %448 = vadd.xlane.f32.xlu0 %v402
        %v449 = vpop.xlane.xlu0 %448
        %450 = vadd.xlane.f32.xlu0 %v403
        %v451 = vpop.xlane.xlu0 %450
        %452 = vadd.xlane.f32.xlu0 %v404
        %v453 = vpop.xlane.xlu0 %452
        %454 = vadd.xlane.f32.xlu0 %v405
        %v455 = vpop.xlane.xlu0 %454
        %456 = vadd.xlane.f32.xlu0 %v406
        %v457 = vpop.xlane.xlu0 %456
        %458 = vadd.xlane.f32.xlu0 %v407
        %v459 = vpop.xlane.xlu0 %458
        %460 = vadd.xlane.f32.xlu0 %v408
        %v461 = vpop.xlane.xlu0 %460
        %462 = vadd.xlane.f32.xlu0 %v409
        %v463 = vpop.xlane.xlu0 %462
        %464 = vadd.xlane.f32.xlu0 %v410
        %v465 = vpop.xlane.xlu0 %464
        %466 = vadd.xlane.f32.xlu0 %v411
        %v467 = vpop.xlane.xlu0 %466
        %468 = vadd.xlane.f32.xlu0 %v412
        %v469 = vpop.xlane.xlu0 %468
        %470 = vadd.xlane.f32.xlu0 %v413
        %v471 = vpop.xlane.xlu0 %470
        %472 = vadd.xlane.f32.xlu0 %v414
        %v473 = vpop.xlane.xlu0 %472
        %474 = vadd.xlane.f32.xlu0 %v415
        %v475 = vpop.xlane.xlu0 %474
        %476 = vadd.xlane.f32.xlu0 %v416
        %v477 = vpop.xlane.xlu0 %476
        %478 = vadd.xlane.f32.xlu0 %v417
        %v479 = vpop.xlane.xlu0 %478
        %480 = vadd.xlane.f32.xlu0 %v418
        %v481 = vpop.xlane.xlu0 %480
        %482 = vadd.xlane.f32.xlu0 %v419
        %v483 = vpop.xlane.xlu0 %482
        %v484 = vmax.f32 %v421, 1e-24
        %v485 = vmax.f32 %v423, 1e-24
        %v486 = vmax.f32 %v425, 1e-24
        %v487 = vmax.f32 %v427, 1e-24
        %v488 = vmax.f32 %v429, 1e-24
        %v489 = vmax.f32 %v431, 1e-24
        %v490 = vmax.f32 %v433, 1e-24
        %v491 = vmax.f32 %v435, 1e-24
        %v492 = vmax.f32 %v437, 1e-24
        %v493 = vmax.f32 %v439, 1e-24
        %v494 = vmax.f32 %v441, 1e-24
        %v495 = vmax.f32 %v443, 1e-24
        %v496 = vmax.f32 %v445, 1e-24
        %v497 = vmax.f32 %v447, 1e-24
        %v498 = vmax.f32 %v449, 1e-24
        %v499 = vmax.f32 %v451, 1e-24
        %v500 = vmax.f32 %v453, 1e-24
        %v501 = vmax.f32 %v455, 1e-24
        %v502 = vmax.f32 %v457, 1e-24
        %v503 = vmax.f32 %v459, 1e-24
        %v504 = vmax.f32 %v461, 1e-24
        %v505 = vmax.f32 %v463, 1e-24
        %v506 = vmax.f32 %v465, 1e-24
        %v507 = vmax.f32 %v467, 1e-24
        %v508 = vmax.f32 %v469, 1e-24
        %v509 = vmax.f32 %v471, 1e-24
        %v510 = vmax.f32 %v473, 1e-24
        %v511 = vmax.f32 %v475, 1e-24
        %v512 = vmax.f32 %v477, 1e-24
        %v513 = vmax.f32 %v479, 1e-24
        %v514 = vmax.f32 %v481, 1e-24
        %v515 = vmax.f32 %v483, 1e-24
        %v516 = vrsqrt.pop %v484
        %v517 = vmul.f32 %v516, %v484
        %v518 = vmul.f32 %v517, %v516
        %v519 = vmul.f32 0.5, %v518
        %v520 = vsub.f32 1.5, %v519
        %v521 = vmul.f32 %v516, %v520
        %vm522 = vweird.f32 %v484
        %vm523 = vweird.f32 %v516
        %vm524 = vmor %vm522, %vm523
        %v525 = vsel %vm524, %v516, %v521
        %v526 = vrsqrt.pop %v485
        %v527 = vmul.f32 %v526, %v485
        %v528 = vmul.f32 %v527, %v526
        %v529 = vmul.f32 0.5, %v528
        %v530 = vsub.f32 1.5, %v529
        %v531 = vmul.f32 %v526, %v530
        %vm532 = vweird.f32 %v485
        %vm533 = vweird.f32 %v526
        %vm534 = vmor %vm532, %vm533
        %v535 = vsel %vm534, %v526, %v531
        %v536 = vrsqrt.pop %v486
        %v537 = vmul.f32 %v536, %v486
        %v538 = vmul.f32 %v537, %v536
        %v539 = vmul.f32 0.5, %v538
        %v540 = vsub.f32 1.5, %v539
        %v541 = vmul.f32 %v536, %v540
        %vm542 = vweird.f32 %v486
        %vm543 = vweird.f32 %v536
        %vm544 = vmor %vm542, %vm543
        %v545 = vsel %vm544, %v536, %v541
        %v546 = vrsqrt.pop %v487
        %v547 = vmul.f32 %v546, %v487
        %v548 = vmul.f32 %v547, %v546
        %v549 = vmul.f32 0.5, %v548
        %v550 = vsub.f32 1.5, %v549
        %v551 = vmul.f32 %v546, %v550
        %vm552 = vweird.f32 %v487
        %vm553 = vweird.f32 %v546
        %vm554 = vmor %vm552, %vm553
        %v555 = vsel %vm554, %v546, %v551
        %v556 = vrsqrt.pop %v488
        %v557 = vmul.f32 %v556, %v488
        %v558 = vmul.f32 %v557, %v556
        %v559 = vmul.f32 0.5, %v558
        %v560 = vsub.f32 1.5, %v559
        %v561 = vmul.f32 %v556, %v560
        %vm562 = vweird.f32 %v488
        %vm563 = vweird.f32 %v556
        %vm564 = vmor %vm562, %vm563
        %v565 = vsel %vm564, %v556, %v561
        %v566 = vrsqrt.pop %v489
        %v567 = vmul.f32 %v566, %v489
        %v568 = vmul.f32 %v567, %v566
        %v569 = vmul.f32 0.5, %v568
        %v570 = vsub.f32 1.5, %v569
        %v571 = vmul.f32 %v566, %v570
        %vm572 = vweird.f32 %v489
        %vm573 = vweird.f32 %v566
        %vm574 = vmor %vm572, %vm573
        %v575 = vsel %vm574, %v566, %v571
        %v576 = vrsqrt.pop %v490
        %v577 = vmul.f32 %v576, %v490
        %v578 = vmul.f32 %v577, %v576
        %v579 = vmul.f32 0.5, %v578
        %v580 = vsub.f32 1.5, %v579
        %v581 = vmul.f32 %v576, %v580
        %vm582 = vweird.f32 %v490
        %vm583 = vweird.f32 %v576
        %vm584 = vmor %vm582, %vm583
        %v585 = vsel %vm584, %v576, %v581
        %v586 = vrsqrt.pop %v491
        %v587 = vmul.f32 %v586, %v491
        %v588 = vmul.f32 %v587, %v586
        %v589 = vmul.f32 0.5, %v588
        %v590 = vsub.f32 1.5, %v589
        %v591 = vmul.f32 %v586, %v590
        %vm592 = vweird.f32 %v491
        %vm593 = vweird.f32 %v586
        %vm594 = vmor %vm592, %vm593
        %v595 = vsel %vm594, %v586, %v591
        %v596 = vrsqrt.pop %v492
        %v597 = vmul.f32 %v596, %v492
        %v598 = vmul.f32 %v597, %v596
        %v599 = vmul.f32 0.5, %v598
        %v600 = vsub.f32 1.5, %v599
        %v601 = vmul.f32 %v596, %v600
        %vm602 = vweird.f32 %v492
        %vm603 = vweird.f32 %v596
        %vm604 = vmor %vm602, %vm603
        %v605 = vsel %vm604, %v596, %v601
        %v606 = vrsqrt.pop %v493
        %v607 = vmul.f32 %v606, %v493
        %v608 = vmul.f32 %v607, %v606
        %v609 = vmul.f32 0.5, %v608
        %v610 = vsub.f32 1.5, %v609
        %v611 = vmul.f32 %v606, %v610
        %vm612 = vweird.f32 %v493
        %vm613 = vweird.f32 %v606
        %vm614 = vmor %vm612, %vm613
        %v615 = vsel %vm614, %v606, %v611
        %v616 = vrsqrt.pop %v494
        %v617 = vmul.f32 %v616, %v494
        %v618 = vmul.f32 %v617, %v616
        %v619 = vmul.f32 0.5, %v618
        %v620 = vsub.f32 1.5, %v619
        %v621 = vmul.f32 %v616, %v620
        %vm622 = vweird.f32 %v494
        %vm623 = vweird.f32 %v616
        %vm624 = vmor %vm622, %vm623
        %v625 = vsel %vm624, %v616, %v621
        %v626 = vrsqrt.pop %v495
        %v627 = vmul.f32 %v626, %v495
        %v628 = vmul.f32 %v627, %v626
        %v629 = vmul.f32 0.5, %v628
        %v630 = vsub.f32 1.5, %v629
        %v631 = vmul.f32 %v626, %v630
        %vm632 = vweird.f32 %v495
        %vm633 = vweird.f32 %v626
        %vm634 = vmor %vm632, %vm633
        %v635 = vsel %vm634, %v626, %v631
        %v636 = vrsqrt.pop %v496
        %v637 = vmul.f32 %v636, %v496
        %v638 = vmul.f32 %v637, %v636
        %v639 = vmul.f32 0.5, %v638
        %v640 = vsub.f32 1.5, %v639
        %v641 = vmul.f32 %v636, %v640
        %vm642 = vweird.f32 %v496
        %vm643 = vweird.f32 %v636
        %vm644 = vmor %vm642, %vm643
        %v645 = vsel %vm644, %v636, %v641
        %v646 = vrsqrt.pop %v497
        %v647 = vmul.f32 %v646, %v497
        %v648 = vmul.f32 %v647, %v646
        %v649 = vmul.f32 0.5, %v648
        %v650 = vsub.f32 1.5, %v649
        %v651 = vmul.f32 %v646, %v650
        %vm652 = vweird.f32 %v497
        %vm653 = vweird.f32 %v646
        %vm654 = vmor %vm652, %vm653
        %v655 = vsel %vm654, %v646, %v651
        %v656 = vrsqrt.pop %v498
        %v657 = vmul.f32 %v656, %v498
        %v658 = vmul.f32 %v657, %v656
        %v659 = vmul.f32 0.5, %v658
        %v660 = vsub.f32 1.5, %v659
        %v661 = vmul.f32 %v656, %v660
        %vm662 = vweird.f32 %v498
        %vm663 = vweird.f32 %v656
        %vm664 = vmor %vm662, %vm663
        %v665 = vsel %vm664, %v656, %v661
        %v666 = vrsqrt.pop %v499
        %v667 = vmul.f32 %v666, %v499
        %v668 = vmul.f32 %v667, %v666
        %v669 = vmul.f32 0.5, %v668
        %v670 = vsub.f32 1.5, %v669
        %v671 = vmul.f32 %v666, %v670
        %vm672 = vweird.f32 %v499
        %vm673 = vweird.f32 %v666
        %vm674 = vmor %vm672, %vm673
        %v675 = vsel %vm674, %v666, %v671
        %v676 = vrsqrt.pop %v500
        %v677 = vmul.f32 %v676, %v500
        %v678 = vmul.f32 %v677, %v676
        %v679 = vmul.f32 0.5, %v678
        %v680 = vsub.f32 1.5, %v679
        %v681 = vmul.f32 %v676, %v680
        %vm682 = vweird.f32 %v500
        %vm683 = vweird.f32 %v676
        %vm684 = vmor %vm682, %vm683
        %v685 = vsel %vm684, %v676, %v681
        %v686 = vrsqrt.pop %v501
        %v687 = vmul.f32 %v686, %v501
        %v688 = vmul.f32 %v687, %v686
        %v689 = vmul.f32 0.5, %v688
        %v690 = vsub.f32 1.5, %v689
        %v691 = vmul.f32 %v686, %v690
        %vm692 = vweird.f32 %v501
        %vm693 = vweird.f32 %v686
        %vm694 = vmor %vm692, %vm693
        %v695 = vsel %vm694, %v686, %v691
        %v696 = vrsqrt.pop %v502
        %v697 = vmul.f32 %v696, %v502
        %v698 = vmul.f32 %v697, %v696
        %v699 = vmul.f32 0.5, %v698
        %v700 = vsub.f32 1.5, %v699
        %v701 = vmul.f32 %v696, %v700
        %vm702 = vweird.f32 %v502
        %vm703 = vweird.f32 %v696
        %vm704 = vmor %vm702, %vm703
        %v705 = vsel %vm704, %v696, %v701
        %v706 = vrsqrt.pop %v503
        %v707 = vmul.f32 %v706, %v503
        %v708 = vmul.f32 %v707, %v706
        %v709 = vmul.f32 0.5, %v708
        %v710 = vsub.f32 1.5, %v709
        %v711 = vmul.f32 %v706, %v710
        %vm712 = vweird.f32 %v503
        %vm713 = vweird.f32 %v706
        %vm714 = vmor %vm712, %vm713
        %v715 = vsel %vm714, %v706, %v711
        %v716 = vrsqrt.pop %v504
        %v717 = vmul.f32 %v716, %v504
        %v718 = vmul.f32 %v717, %v716
        %v719 = vmul.f32 0.5, %v718
        %v720 = vsub.f32 1.5, %v719
        %v721 = vmul.f32 %v716, %v720
        %vm722 = vweird.f32 %v504
        %vm723 = vweird.f32 %v716
        %vm724 = vmor %vm722, %vm723
        %v725 = vsel %vm724, %v716, %v721
        %v726 = vrsqrt.pop %v505
        %v727 = vmul.f32 %v726, %v505
        %v728 = vmul.f32 %v727, %v726
        %v729 = vmul.f32 0.5, %v728
        %v730 = vsub.f32 1.5, %v729
        %v731 = vmul.f32 %v726, %v730
        %vm732 = vweird.f32 %v505
        %vm733 = vweird.f32 %v726
        %vm734 = vmor %vm732, %vm733
        %v735 = vsel %vm734, %v726, %v731
        %v736 = vrsqrt.pop %v506
        %v737 = vmul.f32 %v736, %v506
        %v738 = vmul.f32 %v737, %v736
        %v739 = vmul.f32 0.5, %v738
        %v740 = vsub.f32 1.5, %v739
        %v741 = vmul.f32 %v736, %v740
        %vm742 = vweird.f32 %v506
        %vm743 = vweird.f32 %v736
        %vm744 = vmor %vm742, %vm743
        %v745 = vsel %vm744, %v736, %v741
        %v746 = vrsqrt.pop %v507
        %v747 = vmul.f32 %v746, %v507
        %v748 = vmul.f32 %v747, %v746
        %v749 = vmul.f32 0.5, %v748
        %v750 = vsub.f32 1.5, %v749
        %v751 = vmul.f32 %v746, %v750
        %vm752 = vweird.f32 %v507
        %vm753 = vweird.f32 %v746
        %vm754 = vmor %vm752, %vm753
        %v755 = vsel %vm754, %v746, %v751
        %v756 = vrsqrt.pop %v508
        %v757 = vmul.f32 %v756, %v508
        %v758 = vmul.f32 %v757, %v756
        %v759 = vmul.f32 0.5, %v758
        %v760 = vsub.f32 1.5, %v759
        %v761 = vmul.f32 %v756, %v760
        %vm762 = vweird.f32 %v508
        %vm763 = vweird.f32 %v756
        %vm764 = vmor %vm762, %vm763
        %v765 = vsel %vm764, %v756, %v761
        %v766 = vrsqrt.pop %v509
        %v767 = vmul.f32 %v766, %v509
        %v768 = vmul.f32 %v767, %v766
        %v769 = vmul.f32 0.5, %v768
        %v770 = vsub.f32 1.5, %v769
        %v771 = vmul.f32 %v766, %v770
        %vm772 = vweird.f32 %v509
        %vm773 = vweird.f32 %v766
        %vm774 = vmor %vm772, %vm773
        %v775 = vsel %vm774, %v766, %v771
        %v776 = vrsqrt.pop %v510
        %v777 = vmul.f32 %v776, %v510
        %v778 = vmul.f32 %v777, %v776
        %v779 = vmul.f32 0.5, %v778
        %v780 = vsub.f32 1.5, %v779
        %v781 = vmul.f32 %v776, %v780
        %vm782 = vweird.f32 %v510
        %vm783 = vweird.f32 %v776
        %vm784 = vmor %vm782, %vm783
        %v785 = vsel %vm784, %v776, %v781
        %v786 = vrsqrt.pop %v511
        %v787 = vmul.f32 %v786, %v511
        %v788 = vmul.f32 %v787, %v786
        %v789 = vmul.f32 0.5, %v788
        %v790 = vsub.f32 1.5, %v789
        %v791 = vmul.f32 %v786, %v790
        %vm792 = vweird.f32 %v511
        %vm793 = vweird.f32 %v786
        %vm794 = vmor %vm792, %vm793
        %v795 = vsel %vm794, %v786, %v791
        %v796 = vrsqrt.pop %v512
        %v797 = vmul.f32 %v796, %v512
        %v798 = vmul.f32 %v797, %v796
        %v799 = vmul.f32 0.5, %v798
        %v800 = vsub.f32 1.5, %v799
        %v801 = vmul.f32 %v796, %v800
        %vm802 = vweird.f32 %v512
        %vm803 = vweird.f32 %v796
        %vm804 = vmor %vm802, %vm803
        %v805 = vsel %vm804, %v796, %v801
        %v806 = vrsqrt.pop %v513
        %v807 = vmul.f32 %v806, %v513
        %v808 = vmul.f32 %v807, %v806
        %v809 = vmul.f32 0.5, %v808
        %v810 = vsub.f32 1.5, %v809
        %v811 = vmul.f32 %v806, %v810
        %vm812 = vweird.f32 %v513
        %vm813 = vweird.f32 %v806
        %vm814 = vmor %vm812, %vm813
        %v815 = vsel %vm814, %v806, %v811
        %v816 = vrsqrt.pop %v514
        %v817 = vmul.f32 %v816, %v514
        %v818 = vmul.f32 %v817, %v816
        %v819 = vmul.f32 0.5, %v818
        %v820 = vsub.f32 1.5, %v819
        %v821 = vmul.f32 %v816, %v820
        %vm822 = vweird.f32 %v514
        %vm823 = vweird.f32 %v816
        %vm824 = vmor %vm822, %vm823
        %v825 = vsel %vm824, %v816, %v821
        %v826 = vrsqrt.pop %v515
        %v827 = vmul.f32 %v826, %v515
        %v828 = vmul.f32 %v827, %v826
        %v829 = vmul.f32 0.5, %v828
        %v830 = vsub.f32 1.5, %v829
        %v831 = vmul.f32 %v826, %v830
        %vm832 = vweird.f32 %v515
        %vm833 = vweird.f32 %v826
        %vm834 = vmor %vm832, %vm833
        %v835 = vsel %vm834, %v826, %v831
        %v836 = vmul.f32 %v356, %v525
        %v837 = vmul.f32 %v357, %v535
        %v838 = vmul.f32 %v358, %v545
        %v839 = vmul.f32 %v359, %v555
        %v840 = vmul.f32 %v360, %v565
        %v841 = vmul.f32 %v361, %v575
        %v842 = vmul.f32 %v362, %v585
        %v843 = vmul.f32 %v363, %v595
        %v844 = vmul.f32 %v364, %v605
        %v845 = vmul.f32 %v365, %v615
        %v846 = vmul.f32 %v366, %v625
        %v847 = vmul.f32 %v367, %v635
        %v848 = vmul.f32 %v368, %v645
        %v849 = vmul.f32 %v369, %v655
        %v850 = vmul.f32 %v370, %v665
        %v851 = vmul.f32 %v371, %v675
        %v852 = vmul.f32 %v372, %v685
        %v853 = vmul.f32 %v373, %v695
        %v854 = vmul.f32 %v374, %v705
        %v855 = vmul.f32 %v375, %v715
        %v856 = vmul.f32 %v376, %v725
        %v857 = vmul.f32 %v377, %v735
        %v858 = vmul.f32 %v378, %v745
        %v859 = vmul.f32 %v379, %v755
        %v860 = vmul.f32 %v380, %v765
        %v861 = vmul.f32 %v381, %v775
        %v862 = vmul.f32 %v382, %v785
        %v863 = vmul.f32 %v383, %v795
        %v864 = vmul.f32 %v384, %v805
        %v865 = vmul.f32 %v385, %v815
        %v866 = vmul.f32 %v386, %v825
        %v867 = vmul.f32 %v387, %v835
        %v868 = vld [vmem:[%s1] sm:$0xff]
        %v869 = vld [vmem:[%s1 + $0x8] sm:$0xff]
        %870 = vmatpush.xpose.msra.mxu0 %v851
        %871 = vmatpush.xpose.msra.mxu0 %v850
        %872 = vmatpush.xpose.msra.mxu0 %v849
        %873 = vmatpush.xpose.msra.mxu0 %v848
        %874 = vmatpush.xpose.msra.mxu0 %v847
        %875 = vmatpush.xpose.msra.mxu0 %v846
        %876 = vmatpush.xpose.msra.mxu0 %v845
        %877 = vmatpush.xpose.msra.mxu0 %v844
        %878 = vmatpush.xpose.msra.mxu0 %v843
        %879 = vmatpush.xpose.msra.mxu0 %v842
        %880 = vmatpush.xpose.msra.mxu0 %v841
        %881 = vmatpush.xpose.msra.mxu0 %v840
        %882 = vmatpush.xpose.msra.mxu0 %v839
        %883 = vmatpush.xpose.msra.mxu0 %v838
        %884 = vmatpush.xpose.msra.mxu0 %v837
        %885 = vmatpush.xpose.msra.mxu0 %v836
        %886 = vmatmul.f32.gmra.mxu0 %v868
        %v887 = vpop.f32.mrf.mxu0
        %v888 = vadd.f32 0.0, %v887
        %889 = vmatmul.f32.gmra.mxu0 %v869
        %v890 = vpop.f32.mrf.mxu0
        %v891 = vadd.f32 0.0, %v890
        %892 = vdwg.mxu0
        %893 = vmatpush.xpose.msra.mxu0 %v867
        %894 = vmatpush.xpose.msra.mxu0 %v866
        %895 = vmatpush.xpose.msra.mxu0 %v865
        %896 = vmatpush.xpose.msra.mxu0 %v864
        %897 = vmatpush.xpose.msra.mxu0 %v863
        %898 = vmatpush.xpose.msra.mxu0 %v862
        %899 = vmatpush.xpose.msra.mxu0 %v861
        %900 = vmatpush.xpose.msra.mxu0 %v860
        %901 = vmatpush.xpose.msra.mxu0 %v859
        %902 = vmatpush.xpose.msra.mxu0 %v858
        %903 = vmatpush.xpose.msra.mxu0 %v857
        %904 = vmatpush.xpose.msra.mxu0 %v856
        %905 = vmatpush.xpose.msra.mxu0 %v855
        %906 = vmatpush.xpose.msra.mxu0 %v854
        %907 = vmatpush.xpose.msra.mxu0 %v853
        %908 = vmatpush.xpose.msra.mxu0 %v852
        %909 = vmatmul.f32.gmra.mxu0 %v868
        %v910 = vpop.f32.mrf.mxu0
        %v911 = vadd.f32 0.0, %v910
        %912 = vmatmul.f32.gmra.mxu0 %v869
        %v913 = vpop.f32.mrf.mxu0
        %v914 = vadd.f32 0.0, %v913
        %915 = vdwg.mxu0
        %916 = vst [vmem:[%s290] sm:$0xff] %v888
        %917 = vst [vmem:[%s290 + $0x8] sm:$0xff] %v911
        %918 = vst [vmem:[%s290 + $0x10] sm:$0xff] %v891
        %919 = vst [vmem:[%s290 + $0x18] sm:$0xff] %v914
        %s920 = sadd.s32 %s29, %s30
        %s921 = smul.u32 %s920, 256
        %v922 = vlaneseq
        %v923 = vand.u32 %v922, 127
        %v924 = vadd.s32 %v923, 128
        %v925 = vstv %s921
        %v926 = vadd.s32 %v923, %v925
        %v927 = vadd.s32 %v924, %v925
        %v928 = vld [vmem:[%s3] sm:$0xff]
        %v929 = vld [vmem:[%s3 + $0x8] sm:$0xff]
        %930 = vset.pattern.permute.xlu0 0
        %931 = vperm.xlu0 %930, %v928
        %v932 = vpop.permute.xlu0 %931
        %933 = vset.pattern.permute.xlu0 0
        %934 = vperm.xlu0 %933, %v929
        %v935 = vpop.permute.xlu0 %934
        %vm936 = vcmp.eq.s32.totalorder %v926, %v932
        %vm937 = vcmp.eq.s32.totalorder %v927, %v932
        %vm938 = vcmp.eq.s32.totalorder %v926, %v935
        %vm939 = vcmp.eq.s32.totalorder %v927, %v935
        %s940 = sld [smem:[#allocation2]]
        %v941 = vstv %s940
        %v942 = vmul.f32 %v941, %v888
        %v943 = vmul.f32 %v941, %v911
        %v944 = vmul.f32 %v941, %v891
        %v945 = vmul.f32 %v941, %v914
        %v946 = vmul.f32 %v942, 1.442695
        %v947 = vpow.pop %v946
        %v948 = vmul.f32 %v943, 1.442695
        %v949 = vpow.pop %v948
        %v950 = vmul.f32 %v944, 1.442695
        %v951 = vpow.pop %v950
        %v952 = vmul.f32 %v945, 1.442695
        %v953 = vpow.pop %v952
        %vm954 = vmxor %vm936, 1
        %vm955 = vmxor %vm937, 1
        %vm956 = vmxor %vm938, 1
        %vm957 = vmxor %vm939, 1
        %v958 = vsel %vm954, %v947, 0.0
        %v959 = vsel %vm955, %v949, 0.0
        %v960 = vsel %vm956, %v951, 0.0
        %v961 = vsel %vm957, %v953, 0.0
        %v962 = vadd.f32 %v958, %v959
        %963 = vadd.xlane.f32.xlu0 %v962
        %v964 = vpop.xlane.xlu0 %963
        %v965 = vadd.f32 %v960, %v961
        %966 = vadd.xlane.f32.xlu0 %v965
        %v967 = vpop.xlane.xlu0 %966
        %v968 = vld [vmem:[%s309] sm:$0x1]
        %v969 = vadd.f32 %v964, %v967
        %v970 = vrot.slane %v969, 4
        %v971 = vadd.f32 %v969, %v970
        %v972 = vrot.slane %v971, 2
        %v973 = vadd.f32 %v971, %v972
        %v974 = vrot.slane %v973, 1
        %v975 = vadd.f32 %v973, %v974
        %v976 = vadd.f32 %v968, %v975
        %vm977 = vcmask 0
        %978 = vst.msk [vmem:[%s309] sm:$0x1] %vm977, %v976
        %v979 = vmax.f32 %v888, -0.9999999
        %v980 = vmax.f32 %v911, -0.9999999
        %v981 = vmax.f32 %v891, -0.9999999
        %v982 = vmax.f32 %v914, -0.9999999
        %v983 = vmin.f32 %v979, 0.9999999
        %v984 = vmin.f32 %v980, 0.9999999
        %v985 = vmin.f32 %v981, 0.9999999
        %v986 = vmin.f32 %v982, 0.9999999
        %v987 = vsel %vm936, %v983, 0.0
        %v988 = vsel %vm937, %v984, 0.0
        %v989 = vsel %vm938, %v985, 0.0
        %v990 = vsel %vm939, %v986, 0.0
        %v991 = vadd.f32 %v987, %v988
        %992 = vadd.xlane.f32.xlu0 %v991
        %v993 = vpop.xlane.xlu0 %992
        %v994 = vadd.f32 %v989, %v990
        %995 = vadd.xlane.f32.xlu0 %v994
        %v996 = vpop.xlane.xlu0 %995
        %v997 = vld [vmem:[%s314] sm:$0xff]
        %v998 = vld [vmem:[%s314 + $0x8] sm:$0xff]
        %v999 = vadd.f32 %v997, %v993
        %v1000 = vadd.f32 %v998, %v996
        %vm1001 = vcmask 7168
        %1002 = vst.msk [vmem:[%s314] sm:$0xff] %vm1001, %v999
        %1003 = vst.msk [vmem:[%s314 + $0x8] sm:$0xff] %vm1001, %v1000
        %s1004 = sand.u32 %s138, 1
        %s1005 = scalar_lea.sflag [#allocation5], %s1004
        %s1006 = sand.u32 %s138, 1
        %s1007 = smul.addr %s1006, 32
        %s1008 = scalar_lea.vmem [#allocation6], %s1007
        %p1009 = scmp.lt.s32.totalorder %s29, 1
        %s1010 = scalar_select %p1009, %s29, 1
        %s1011 = scalar_lea.vmem %s5, %s1010
        %p1012 = scmp.lt.s32.totalorder %s29, 1
        %s1013 = scalar_select %p1012, %s29, 1
        %s1014 = smul.addr %s1013, 2
        %s1015 = smul.addr %s1014, 8
        %s1016 = scalar_lea.vmem %s6, %s1015
        // Predicated region
        $region45: #{tpu_custom_call.1} parent=35 // pred_check
          %p1017 = pneg %p148
        $region46: #{tpu_custom_call.1} parent=35 // pred_check_branch
          %1019 = sbr.rel (%p1017) target = $region48
        $region47: #{tpu_custom_call.1} parent=35 // pred_region
          %s1020 = sadd.s32 %s29, %s30
          %s1021 = smul.u32 2, %s1020
          %1023 = vsyncadd %s1005, 0
          %s1024 = smul.addr %s1021, 8
          %s1025 = scalar_lea.hbm %s4, %s1024
          %s1026 = sshll.u32 %s1008, 4
          %s1027 = int_to_ptr.vmem [resolvable:$true] %s1026
          %s1028 = sshll.u32 %s1025, 4
          %s1029 = int_to_ptr.hbm [resolvable:$true] %s1028
          %1034 = dma.vmem_to_hbm [thread:$0]  %s1027, 512, %s1029, %s1005, 256, 512, 16
        $region48: #{tpu_custom_call.1} parent=35 // pred_fallthru
          _
        // Predicated region
        $region49: #{tpu_custom_call.1} parent=35 // pred_check
          %p1035 = pneg %p174
        $region50: #{tpu_custom_call.1} parent=35 // pred_check_branch
          %1037 = sbr.rel (%p1035) target = $region52
        $region51: #{tpu_custom_call.1} parent=35 // pred_region
          _
        $region52: #{tpu_custom_call.1} parent=35 // pred_fallthru
          _
        // Predicated region
        $region53: #{tpu_custom_call.1} parent=35 // pred_check
          %p1038 = pneg %p200
        $region54: #{tpu_custom_call.1} parent=35 // pred_check_branch
          %1040 = sbr.rel (%p1038) target = $region56
        $region55: #{tpu_custom_call.1} parent=35 // pred_region
          _
        $region56: #{tpu_custom_call.1} parent=35 // pred_fallthru
          _
      $region36: #{tpu_custom_call.1} parent=5 // pred_fallthru
        _
      %p1041 = scmp.le.s32.totalorder 2, %s20
      // Predicated region
      $region57: #{tpu_custom_call.1} parent=5 // pred_check
        %p1042 = pneg %p1041
      $region58: #{tpu_custom_call.1} parent=5 // pred_check_branch
        %1044 = sbr.rel (%p1042) target = $region60
      $region59: #{tpu_custom_call.1} parent=5 // pred_region
        %s1045 = ssub.s32 %s20, 2
        // Predicated region
        $region61: #{tpu_custom_call.1} parent=59 // pred_check
          %p1046 = pneg %p154
        $region62: #{tpu_custom_call.1} parent=59 // pred_check_branch
          %1048 = sbr.rel (%p1046) target = $region64
        $region63: #{tpu_custom_call.1} parent=59 // pred_region
          %s1049 = sand.u32 %s139, 1
          %s1050 = scalar_lea.sflag [#allocation5], %s1049
          %s1051 = sand.u32 %s139, 1
          %s1052 = smul.addr %s1051, 32
          %s1053 = scalar_lea.vmem [#allocation6], %s1052
          %1055 = dma.done %s1050, 512
        $region64: #{tpu_custom_call.1} parent=59 // pred_fallthru
          _
        // Predicated region
        $region65: #{tpu_custom_call.1} parent=59 // pred_check
          %p1056 = pneg %p180
        $region66: #{tpu_custom_call.1} parent=59 // pred_check_branch
          %1058 = sbr.rel (%p1056) target = $region68
        $region67: #{tpu_custom_call.1} parent=59 // pred_region
          %p1059 = scmp.lt.s32.totalorder %s31, 1
          %s1060 = scalar_select %p1059, %s31, 1
          %s1061 = scalar_lea.vmem %s5, %s1060
        $region68: #{tpu_custom_call.1} parent=59 // pred_fallthru
          _
        // Predicated region
        $region69: #{tpu_custom_call.1} parent=59 // pred_check
          %p1062 = pneg %p206
        $region70: #{tpu_custom_call.1} parent=59 // pred_check_branch
          %1064 = sbr.rel (%p1062) target = $region72
        $region71: #{tpu_custom_call.1} parent=59 // pred_region
          %p1065 = scmp.lt.s32.totalorder %s31, 1
          %s1066 = scalar_select %p1065, %s31, 1
          %s1067 = smul.addr %s1066, 2
          %s1068 = smul.addr %s1067, 8
          %s1069 = scalar_lea.vmem %s6, %s1068
        $region72: #{tpu_custom_call.1} parent=59 // pred_fallthru
          _
      $region60: #{tpu_custom_call.1} parent=5 // pred_fallthru
        _
    $region6: #{tpu_custom_call.1} parent=1 // loop_footer
      %s24 = sadd.s32 1, %s20
    $region7: #{tpu_custom_call.1} parent=1 // loop_footer_branch
      %19 = sbr.rel target = $region3
    $region8: #{tpu_custom_call.1} parent=1 // loop_exit
      _
    %1070 = vsyncpa [#allocation4], 1
    %s1071 = scalar_lea.sflag [#allocation4], 1
    %1072 = vsyncpa %s1071, 1
    %1073 = vsyncpa [#allocation5], 1
    %s1074 = scalar_lea.sflag [#allocation5], 1
    %1075 = vsyncpa %s1074, 1

</llo_original>
